<compile_context>
chip_gen: v7x
topology: tpu7x:2x2x1
jax: 0.10.0
libtpu: 0.0.40
codegen_flags: <defaults>
</compile_context>

<pallas_src>
import numpy as np
import jax
import jax.numpy as jnp
from jax.experimental import pallas as pl
from jax.experimental.pallas import tpu as pltpu


def _round_up(x, m):
    return ((x + m - 1) // m) * m


def _num_tensorcores_per_chip():
    """2 on v7x (dual TensorCore), 1 on v5e/v6e. Conservative fallback: 1."""
    try:
        dev = jax.devices()[0]
        if dev.platform != "tpu":
            return 1
        kind = (getattr(dev, "device_kind", "") or "").lower()
        if "v7" in kind:
            return 2
    except Exception:
        pass
    return 1


# ----------------------------------------------------------------------------
# Pallas kernel: JtR = Jt @ (weights * R)
# ----------------------------------------------------------------------------
def _make_jtr_kernel(N, blk, nk, fold_w, needs_mask):
    """Build the kernel; all tiling parameters are static (trace-time) Python ints."""
    nf = blk // fold_w  # number of fold_w-wide lane slices folded into the accumulator

    def kernel(jt_ref, w_ref, r_ref, jtr_ref, acc_ref):
        k = pl.program_id(2)

        @pl.when(k == 0)
        def _():
            acc_ref[...] = jnp.zeros_like(acc_ref)

        # (1, blk) weighted residual, broadcast against the (6, blk) Jacobian chunk.
        wr = w_ref[0].astype(jnp.float32) * r_ref[0].astype(jnp.float32)   # (1, blk)
        contrib = jt_ref[0].astype(jnp.float32) * wr                       # (6, blk)

        if needs_mask:
            # Mask the *contribution* (not just wr): the partial / clamped-duplicate
            # boundary block can contain garbage (possibly NaN/Inf) lanes, and
            # jnp.where selects 0 regardless of NaN in the masked operand.
            gi = pl.program_id(0) * nk + k          # unclamped global block index
            valid = N - gi * blk                    # <= 0 for duplicated (clamped) blocks
            lane = jax.lax.broadcasted_iota(jnp.int32, (6, blk), 1)
            contrib = jnp.where(lane < valid, contrib, 0.0)

        # Fold the (6, blk) contribution down to (6, fold_w) with layout-preserving
        # 128-aligned lane slices (pure VALU adds), so the accumulator RMW traffic
        # does not scale with blk.
        folded = contrib[:, :fold_w]
        for i in range(1, nf):
            folded = folded + contrib[:, i * fold_w:(i + 1) * fold_w]
        acc_ref[...] += folded

        @pl.when(k == pl.num_programs(2) - 1)
        def _():
            # Single cross-lane reduction per (split, batch): (6, fold_w) -> (6, 1).
            jtr_ref[0, 0] = jnp.sum(acc_ref[...], axis=-1,
                                    keepdims=True).astype(jtr_ref.dtype)

    return kernel


def _solver_prep(Jt, w_flat, r_flat, block_n=65536, n_split=None):
    """JtR = Jt @ (w * r) via the Pallas kernel.  Returns (B, 6, 1) float32.

    Inputs may be float32 or bfloat16 (accumulation is always float32)."""
    B, six, N = Jt.shape
    assert six == 6
    if n_split is None:
        # Split the N reduction across both TensorCores only on v7x, and only when
        # the batch axis alone leaves a core idle (odd B, incl. B == 1).
        n_split = 2 if (_num_tensorcores_per_chip() >= 2 and B % 2 == 1) else 1

    # Reduction tile along the pixel axis: multiple of 128 lanes, capped at block_n.
    blk = min(block_n, _round_up(pl.cdiv(N, n_split), 128))
    n_blocks = pl.cdiv(N, blk)            # valid blocks along N
    nk = pl.cdiv(n_blocks, n_split)       # k-steps per split
    needs_mask = (nk * n_split * blk != N)
    fold_w = 2048 if blk % 2048 == 0 else blk

    def n_block_idx(s, k):
        # Clamp so no fully out-of-bounds block is ever requested; the in-kernel mask
        # zeroes the duplicated contribution.
        return jnp.minimum(s * nk + k, n_blocks - 1)

    grid_spec = pltpu.PrefetchScalarGridSpec(
        num_scalar_prefetch=0,
        grid=(n_split, B, nk),
        in_specs=[
            pl.BlockSpec((1, 6, blk), lambda s, b, k: (b, 0, n_block_idx(s, k))),  # Jt
            pl.BlockSpec((1, 1, blk), lambda s, b, k: (b, 0, n_block_idx(s, k))),  # weights
            pl.BlockSpec((1, 1, blk), lambda s, b, k: (b, 0, n_block_idx(s, k))),  # residual
        ],
        out_specs=pl.BlockSpec((1, 1, 6, 1), lambda s, b, k: (b, s, 0, 0)),
        scratch_shapes=[pltpu.VMEM((6, fold_w), jnp.float32)],
    )

    # Explicit VMEM budget: 2x double-buffered inputs + folded accumulator + headroom.
    in_bytes = blk * (6 * Jt.dtype.itemsize
                      + w_flat.dtype.itemsize + r_flat.dtype.itemsize)
    acc_bytes = 6 * fold_w * 4
    vmem_limit = int(min(max(2 * in_bytes + acc_bytes + (4 << 20), 32 << 20), 60 << 20))

    partial = pl.pallas_call(
        _make_jtr_kernel(N, blk, nk, fold_w, needs_mask),
        out_shape=jax.ShapeDtypeStruct((B, n_split, 6, 1), jnp.float32),
        grid_spec=grid_spec,
        compiler_params=pltpu.CompilerParams(
            dimension_semantics=("parallel", "parallel", "arbitrary"),
            vmem_limit_bytes=vmem_limit),
    )(Jt, w_flat, r_flat)

    return jnp.sum(partial, axis=1)  # (B, 6, 1)


# ----------------------------------------------------------------------------
# Glue: damped Hessian + pose update (inverse compositional).  Tiny 6x6 / 3x3 math.
# ----------------------------------------------------------------------------
def _damped_hessian(JtJ):
    """Hessian = JtJ + (1e-6 * trace(JtJ)) * eye(6)   (plain JAX; trivial work)."""
    jtj = JtJ.astype(jnp.float32)
    eye = jnp.eye(6, dtype=jnp.float32)[None]
    trace = jnp.sum(jtj * eye, axis=(1, 2))
    return jtj + (trace * 1e-6)[:, None, None] * eye


def _batch_twist2mat(twist):
    """Rodrigues formula (geometry.batch_twist2Mat), with a small-angle guard."""
    theta = jnp.linalg.norm(twist, axis=1, keepdims=True)                # (B,1)
    small = theta < 1e-6
    safe_theta = jnp.where(small, jnp.ones_like(theta), theta)
    w = twist / safe_theta                                               # == twist when small
    wx, wy, wz = w[:, 0], w[:, 1], w[:, 2]
    z = jnp.zeros_like(wx)
    W = jnp.stack(
        [jnp.stack([z, -wz, wy], axis=-1),
         jnp.stack([wz, z, -wx], axis=-1),
         jnp.stack([-wy, wx, z], axis=-1)], axis=1)                      # (B,3,3)
    th = theta[:, :, None]
    eye = jnp.eye(3, dtype=twist.dtype)[None]
    r_full = eye + jnp.sin(th) * W + (1.0 - jnp.cos(th)) * jnp.matmul(W, W)
    r_small = eye + W            # first-order: W == skew(twist) in the small branch
    return jnp.where(small[:, :, None], r_small, r_full)


def _inverse_update_pose(hessian, jtr, pose0):
    """Equivalent of inverse_update_pose(H, Rhs, pose)."""
    inv_h = jnp.linalg.inv(hessian)                      # parity with torch.inverse
    xi = jnp.matmul(inv_h, jtr)                          # (B,6,1)
    d_r = _batch_twist2mat(-xi[:, :3, 0])                # (B,3,3)
    d_t = -jnp.matmul(d_r, xi[:, 3:])                    # (B,3,1)
    r0, t0 = pose0
    # geometry.batch_Rt_compose: [R|t] o [d_R|d_t] = [R d_R | R d_t + t]
    return jnp.matmul(r0, d_r), jnp.matmul(r0, d_t) + t0


# ----------------------------------------------------------------------------
# Module wrapper
# ----------------------------------------------------------------------------
class DirectSolverNet:
    SOLVER_NO_DAMPING = 0
    SOLVER_RESIDUAL_VOLUME = 1

    def __init__(self, solver_type, samples=10):
        if solver_type == 'Direct-Nodamping':
            self.net = None
            self.type = self.SOLVER_NO_DAMPING
        elif solver_type == 'Direct-ResVol':
            # TODO(synk): 'Direct-ResVol' branch (__regularize_residual_volume + the
            # 96->128->256->6 damping MLP) depends on geometry.* warping / occlusion
            # functions from an external module that is mocked in the source file.
            raise NotImplementedError(
                "Direct-ResVol requires the external `geometry` warping module.")
        else:
            raise NotImplementedError()

    def __call__(self, JtJ, Jt, weights, R, pose0, invD0, invD1, x0, x1, K):
        B = JtJ.shape[0]
        # torch: wR = (weights * R).view(B, -1, 1)  -> flatten in NCHW order.
        # dtypes pass through: feeding bf16 Jt/weights/R halves HBM traffic
        # (accumulation stays f32 in-kernel) if the caller's precision budget allows.
        w_flat = weights.reshape(B, 1, -1)
        r_flat = R.reshape(B, 1, -1)
        jtr = _solver_prep(Jt, w_flat, r_flat)
        hessian = _damped_hessian(JtJ)
        return _inverse_update_pose(hessian, jtr, pose0)


# ----------------------------------------------------------------------------
# Pure-JAX references used as correctness checks.
# ----------------------------------------------------------------------------
def _reference_jtr(Jt, w_flat, r_flat):
    wr = (w_flat.astype(jnp.float32) * r_flat.astype(jnp.float32))        # (B,1,N)
    return jnp.sum(Jt.astype(jnp.float32) * wr, axis=-1, keepdims=True)   # (B,6,1)


def _reference_hessian(JtJ):
    eye = jnp.eye(6, dtype=jnp.float32)[None]
    trace = jnp.sum(JtJ * eye, axis=(1, 2))
    return JtJ + (trace * 1e-6)[:, None, None] * eye


if __name__ == "__main__":
    key = jax.random.PRNGKey(0)
    B, C, H, W = 2, 4, 16, 16
    N = C * H * W
    ks = jax.random.split(key, 16)

    Jt = 0.1 * jax.random.normal(ks[0], (B, 6, N), jnp.float32)
    JtJ = jnp.einsum('bin,bjn->bij', Jt, Jt) + 1e-2 * jnp.eye(6, dtype=jnp.float32)[None]
    weights = jax.random.uniform(ks[1], (B, C, H, W), jnp.float32)
    R = jax.random.normal(ks[2], (B, C, H, W), jnp.float32)

    # initial pose: a proper random rotation + small translation
    R0 = _batch_twist2mat(0.2 * jax.random.normal(ks[3], (B, 3), jnp.float32))
    t0 = 0.1 * jax.random.normal(ks[4], (B, 3, 1), jnp.float32)

    # extra inputs (unused by the Nodamping branch, kept for signature fidelity)
    invD0 = jax.random.uniform(ks[5], (B, 1, H, W), jnp.float32)
    invD1 = jax.random.uniform(ks[6], (B, 1, H, W), jnp.float32)
    x0 = jax.random.normal(ks[7], (B, C, H, W), jnp.float32)
    x1 = jax.random.normal(ks[8], (B, C, H, W), jnp.float32)
    K = jnp.tile(jnp.array([W / 2.0, H / 2.0, W / 2.0, H / 2.0], jnp.float32)[None], (B, 1))

    solver = DirectSolverNet('Direct-Nodamping')
    R_new, t_new = solver(JtJ, Jt, weights, R, (R0, t0), invD0, invD1, x0, x1, K)
    jax.block_until_ready((R_new, t_new))
    assert R_new.shape == (B, 3, 3) and t_new.shape == (B, 3, 1)

    # --- correctness checks of the Pallas-computed JtR against pure JAX ---------
    w_flat = weights.reshape(B, 1, -1)
    r_flat = R.reshape(B, 1, -1)
    jtr_r = _reference_jtr(Jt, w_flat, r_flat)

    # (1) default path (n_split auto, no masking: N multiple of blk)
    jtr_k = _solver_prep(Jt, w_flat, r_flat)
    np.testing.assert_allclose(np.asarray(jtr_k), np.asarray(jtr_r), rtol=1e-4, atol=1e-5)

    # (2) explicit split of the N reduction (v7x dual-core code path), no masking
    jtr_k2 = _solver_prep(Jt, w_flat, r_flat, n_split=2)
    np.testing.assert_allclose(np.asarray(jtr_k2), np.asarray(jtr_r), rtol=1e-4, atol=1e-5)

    # (3) non-multiple-of-128 pixel count: in-kernel tail masking (no padding copies)
    Nc = 1000
    jtr_rp = _reference_jtr(Jt[:, :, :Nc], w_flat[:, :, :Nc], r_flat[:, :, :Nc])
    for ns in (1, 2):
        jtr_kp = _solver_prep(Jt[:, :, :Nc], w_flat[:, :, :Nc], r_flat[:, :, :Nc],
                              n_split=ns)
        np.testing.assert_allclose(np.asarray(jtr_kp), np.asarray(jtr_rp),
                                   rtol=1e-4, atol=1e-5)

    # (4) tiny N with n_split=2: exercises the clamped duplicate-block + full-mask path
    Nt = 100
    jtr_rt = _reference_jtr(Jt[:, :, :Nt], w_flat[:, :, :Nt], r_flat[:, :, :Nt])
    jtr_kt = _solver_prep(Jt[:, :, :Nt], w_flat[:, :, :Nt], r_flat[:, :, :Nt], n_split=2)
    np.testing.assert_allclose(np.asarray(jtr_kt), np.asarray(jtr_rt),
                               rtol=1e-4, atol=1e-5)

    # (5) multi-step reduction (small forced tile): exercises k-accumulation
    jtr_ks = _solver_prep(Jt, w_flat, r_flat, block_n=256, n_split=1)
    np.testing.assert_allclose(np.asarray(jtr_ks), np.asarray(jtr_r), rtol=1e-4, atol=1e-5)

    # (6) accumulator-fold path (blk multiple of 2048, nf > 1) on a larger N
    N2 = 8192
    Jt2 = 0.05 * jax.random.normal(ks[9], (1, 6, N2), jnp.float32)
    w2 = jax.random.uniform(ks[10], (1, 1, N2), jnp.float32)
    r2 = jax.random.normal(ks[11], (1, 1, N2), jnp.float32)
    jtr_r2 = _reference_jtr(Jt2, w2, r2)
    for ns in (1, 2):
        jtr_k6 = _solver_prep(Jt2, w2, r2, n_split=ns)
        np.testing.assert_allclose(np.asarray(jtr_k6), np.asarray(jtr_r2),
                                   rtol=1e-4, atol=1e-4)

    # (7) bf16 inputs (half the HBM traffic; f32 accumulation) — loose tolerance
    jtr_bf = _solver_prep(Jt2.astype(jnp.bfloat16), w2.astype(jnp.bfloat16),
                          r2.astype(jnp.bfloat16), n_split=1)
    np.testing.assert_allclose(np.asarray(jtr_bf), np.asarray(jtr_r2),
                               rtol=3e-2, atol=3e-2)

    # (8) damped Hessian (plain JAX wrapper) against the reference formula
    np.testing.assert_allclose(np.asarray(_damped_hessian(JtJ)),
                               np.asarray(_reference_hessian(JtJ)),
                               rtol=1e-5, atol=1e-6)

    print("KERNEL_OK")
</pallas_src>

<mosaic_0001>
module attributes {stable_mosaic.version = 11 : i64} {
  func.func @kernel(%arg0: i32, %arg1: i32, %arg2: i32, %arg3: memref<1x6x1024xf32, #tpu.memory_space<vmem>>, %arg4: memref<1x1x1024xf32, #tpu.memory_space<vmem>>, %arg5: memref<1x1x1024xf32, #tpu.memory_space<vmem>>, %arg6: memref<1x1x6x1xf32, #tpu.memory_space<vmem>>, %arg7: memref<6x1024xf32, #tpu.memory_space<vmem>>) attributes {dimension_semantics = [#tpu.dimension_semantics<parallel>, #tpu.dimension_semantics<parallel>, #tpu.dimension_semantics<arbitrary>], iteration_bounds = array<i64: 1, 2, 1>, scalar_prefetch = 0 : i64, scratch_operands = 1 : i64, tpu.core_type = #tpu.core_type<tc>, window_params = [{transform_indices = @transform_0, window_bounds = array<i64: 1, 6, 1024>}, {transform_indices = @transform_1, window_bounds = array<i64: 1, 1, 1024>}, {transform_indices = @transform_2, window_bounds = array<i64: 1, 1, 1024>}, {transform_indices = @transform_3, window_bounds = array<i64: 1, 1, 6, 1>}]} {
    %c0_i32 = arith.constant 0 : i32
    %0 = arith.cmpi eq, %arg2, %c0_i32 : i32
    %1 = arith.extui %0 : i1 to i32
    %c0_i32_0 = arith.constant 0 : i32
    %2 = arith.cmpi ne, %1, %c0_i32_0 : i32
    scf.if %2 {
      %cst = arith.constant 0.000000e+00 : f32
      %18 = vector.broadcast %cst : f32 to vector<6x1024xf32>
      %c0_15 = arith.constant 0 : index
      %c0_16 = arith.constant 0 : index
      %19 = vector.load %arg7[%c0_15, %c0_16] : memref<6x1024xf32, #tpu.memory_space<vmem>>, vector<6x1024xf32>
      tpu.vector_store %arg7[%c0_15, %c0_16], %18 {strides = array<i32>} : memref<6x1024xf32, #tpu.memory_space<vmem>>, vector<6x1024xf32>,
    } else {
    }
    %c0 = arith.constant 0 : index
    %c0_1 = arith.constant 0 : index
    %c0_2 = arith.constant 0 : index
    %3 = vector.load %arg4[%c0, %c0_1, %c0_2] : memref<1x1x1024xf32, #tpu.memory_space<vmem>>, vector<1x1x1024xf32>
    %4 = vector.shape_cast %3 : vector<1x1x1024xf32> to vector<1x1024xf32>
    %c0_3 = arith.constant 0 : index
    %c0_4 = arith.constant 0 : index
    %c0_5 = arith.constant 0 : index
    %5 = vector.load %arg5[%c0_3, %c0_4, %c0_5] : memref<1x1x1024xf32, #tpu.memory_space<vmem>>, vector<1x1x1024xf32>
    %6 = vector.shape_cast %5 : vector<1x1x1024xf32> to vector<1x1024xf32>
    %7 = arith.mulf %4, %6 : vector<1x1024xf32>
    %c0_6 = arith.constant 0 : index
    %c0_7 = arith.constant 0 : index
    %c0_8 = arith.constant 0 : index
    %8 = vector.load %arg3[%c0_6, %c0_7, %c0_8] : memref<1x6x1024xf32, #tpu.memory_space<vmem>>, vector<1x6x1024xf32>
    %9 = vector.shape_cast %8 : vector<1x6x1024xf32> to vector<6x1024xf32>
    %10 = vector.broadcast %7 : vector<1x1024xf32> to vector<6x1024xf32>
    %11 = arith.mulf %9, %10 : vector<6x1024xf32>
    %c0_9 = arith.constant 0 : index
    %c0_10 = arith.constant 0 : index
    %12 = vector.load %arg7[%c0_9, %c0_10] : memref<6x1024xf32, #tpu.memory_space<vmem>>, vector<6x1024xf32>
    %13 = arith.addf %12, %11 : vector<6x1024xf32>
    %c0_11 = arith.constant 0 : index
    %c0_12 = arith.constant 0 : index
    %14 = vector.load %arg7[%c0_11, %c0_12] : memref<6x1024xf32, #tpu.memory_space<vmem>>, vector<6x1024xf32>
    tpu.vector_store %arg7[%c0_11, %c0_12], %13 {strides = array<i32>} : memref<6x1024xf32, #tpu.memory_space<vmem>>, vector<6x1024xf32>,
    %c0_i32_13 = arith.constant 0 : i32
    %15 = arith.cmpi eq, %arg2, %c0_i32_13 : i32
    %16 = arith.extui %15 : i1 to i32
    %c0_i32_14 = arith.constant 0 : i32
    %17 = arith.cmpi ne, %16, %c0_i32_14 : i32
    scf.if %17 {
      %c0_15 = arith.constant 0 : index
      %c0_16 = arith.constant 0 : index
      %18 = vector.load %arg7[%c0_15, %c0_16] : memref<6x1024xf32, #tpu.memory_space<vmem>>, vector<6x1024xf32>
      %cst = arith.constant dense<0.000000e+00> : vector<6xf32>
      %19 = vector.multi_reduction <add>, %18, %cst [1] : vector<6x1024xf32> to vector<6xf32>
      %20 = vector.shape_cast %19 : vector<6xf32> to vector<6x1xf32>
      %c0_17 = arith.constant 0 : index
      %c0_18 = arith.constant 0 : index
      %c0_19 = arith.constant 0 : index
      %c0_20 = arith.constant 0 : index
      %21 = vector.load %arg6[%c0_17, %c0_18, %c0_19, %c0_20] : memref<1x1x6x1xf32, #tpu.memory_space<vmem>>, vector<1x1x6x1xf32>
      %22 = vector.shape_cast %21 : vector<1x1x6x1xf32> to vector<6x1xf32>
      %23 = vector.shape_cast %20 : vector<6x1xf32> to vector<1x1x6x1xf32>
      tpu.vector_store %arg6[%c0_17, %c0_18, %c0_19, %c0_20], %23 {strides = array<i32>} : memref<1x1x6x1xf32, #tpu.memory_space<vmem>>, vector<1x1x6x1xf32>,
    } else {
    }
    return
  }
  func.func @transform_0(%arg0: i32, %arg1: i32, %arg2: i32) -> (i32, i32, i32) {
    %c1_i32 = arith.constant 1 : i32
    %0 = arith.muli %arg0, %c1_i32 : i32
    %1 = arith.addi %0, %arg2 : i32
    %c0_i32 = arith.constant 0 : i32
    %2 = arith.minsi %1, %c0_i32 : i32
    %c0_i32_0 = arith.constant 0 : i32
    %c0_i32_1 = arith.constant 0 : i32
    return %arg1, %c0_i32_0, %2 : i32, i32, i32
  }
  func.func @transform_1(%arg0: i32, %arg1: i32, %arg2: i32) -> (i32, i32, i32) {
    %c1_i32 = arith.constant 1 : i32
    %0 = arith.muli %arg0, %c1_i32 : i32
    %1 = arith.addi %0, %arg2 : i32
    %c0_i32 = arith.constant 0 : i32
    %2 = arith.minsi %1, %c0_i32 : i32
    %c0_i32_0 = arith.constant 0 : i32
    %c0_i32_1 = arith.constant 0 : i32
    return %arg1, %c0_i32_0, %2 : i32, i32, i32
  }
  func.func @transform_2(%arg0: i32, %arg1: i32, %arg2: i32) -> (i32, i32, i32) {
    %c1_i32 = arith.constant 1 : i32
    %0 = arith.muli %arg0, %c1_i32 : i32
    %1 = arith.addi %0, %arg2 : i32
    %c0_i32 = arith.constant 0 : i32
    %2 = arith.minsi %1, %c0_i32 : i32
    %c0_i32_0 = arith.constant 0 : i32
    %c0_i32_1 = arith.constant 0 : i32
    return %arg1, %c0_i32_0, %2 : i32, i32, i32
  }
  func.func @transform_3(%arg0: i32, %arg1: i32, %arg2: i32) -> (i32, i32, i32, i32) {
    %c0_i32 = arith.constant 0 : i32
    %c0_i32_0 = arith.constant 0 : i32
    %c0_i32_1 = arith.constant 0 : i32
    return %arg1, %arg0, %c0_i32, %c0_i32_0 : i32, i32, i32, i32
  }
}

</mosaic_0001>

<llo_original>
// kernel: tpu_custom_call.1
$region0: #{tpu_custom_call.1}
  #allocation0 [shape = 'u32[]', space=smem, size = 0x4, offset = 0x4, fixed_abs, tag = 'smem constant byte address 0x4 - core index']
  #allocation1 [shape = 'u32[144,128]{1,0:T(1,128)}', space=vmem, size = 0x12000, scoped, tag = 'internal scratch']
  #allocation2 [shape = 'f32[6,1024]{1,0:T(8,128)}', space=vmem, size = 0x8000, scoped, tag = 'scratch operand']
  %s0 = inlined_call_operand.vmem [shape: f32[2,6,1024], index: 0, kind: input, shape index: {}]
  %s1 = inlined_call_operand.vmem [shape: f32[2,1,1024], index: 1, kind: input, shape index: {}]
  %s2 = inlined_call_operand.vmem [shape: f32[2,1,1024], index: 2, kind: input, shape index: {}]
  %s3 = inlined_call_operand.vmem [shape: f32[2,1,6,1], index: 3, kind: output, shape index: {}]
  %s4 = sld [smem:[#allocation0]]
  $region53: #{tpu_custom_call.1} parent=0
    _
  %s6 = ssub.s32 1, %s4
  %s7 = scalar_select 0, %s6, %s4
  loop: start=0, step=1, limit=4
  $region2: #{tpu_custom_call.1} parent=0 // loop_pre_header
    _
  $region3: #{tpu_custom_call.1} parent=0 // loop_header
    %s9 = sphi 0, %s13
    %p10 = scmp.ge.s32.totalorder %s9, 4
    %s16 = sphi 0, %s35
    %s17 = sphi 0, %s31
    %s18 = sphi 0, %s27
    %s19 = sphi 0, %s16
    %s20 = sphi 0, %s17
    %s21 = sphi 0, %s18
    %s22 = sphi 0, %s19
    %s23 = sphi 0, %s20
    %s24 = sphi 0, %s21
    %s46 = sphi 0, %s48
    %s49 = sphi 0, %s46
    %s50 = sphi 0, %s49
    %s66 = sphi 0, %s50
    %s80 = sphi 0, %s82
    %s83 = sphi 0, %s80
    %s84 = sphi 0, %s83
    %s100 = sphi 0, %s84
    %s114 = sphi 0, %s116
    %s117 = sphi 0, %s114
    %s118 = sphi 0, %s117
    %s134 = sphi 0, %s118
    %s142 = sphi 0, %s144
    %s145 = sphi 0, %s142
    %s146 = sphi 0, %s145
    %s162 = sphi 0, %s146
  $region4: #{tpu_custom_call.1} parent=0 // loop_header_branch
    %12 = sbr.rel (%p10) target = $region8
  $region5: #{tpu_custom_call.1} parent=0 // loop_body
    %s14 = ssub.s32 %s9, 1
    %s15 = ssub.s32 %s9, 2
    %s25 = sadd.s32 1, %s18
    %p26 = scmp.ge.s32.totalorder %s25, 1
    %s27 = scalar_select %p26, 0, %s25
    %s28 = sadd.s32 1, %s17
    %s29 = scalar_select %p26, %s28, %s17
    %p30 = scmp.ge.s32.totalorder %s29, 2
    %s31 = scalar_select %p30, 0, %s29
    %s32 = sadd.s32 1, %s16
    %s33 = scalar_select %p30, %s32, %s16
    %p34 = scmp.ge.s32.totalorder %s33, 1
    %s35 = scalar_select %p34, 0, %s33
    %s36 = sadd.s32 %s16, %s18
    %p37 = scmp.lt.s32.totalorder %s36, 0
    %s38 = scalar_select %p37, %s36, 0
    %s39 = sadd.s32 %s35, %s27
    %p40 = scmp.lt.s32.totalorder %s39, 0
    %s41 = scalar_select %p40, %s39, 0
    %s42 = ssub.s32 %s17, %s31
    %s43 = ssub.s32 %s38, %s41
    %s44 = sor.u32 %s42, %s43
    %p45 = scmp.eq.s32.totalorder %s44, 0
    %s47 = sadd.s32 %s46, 1
    %s48 = scalar_select %p45, %s46, %s47
    %p51 = pneg %p45
    %p52 = scmp.eq.s32.totalorder %s9, 1
    %p53 = por %p51, %p52
    %p54 = scmp.ne.s32.totalorder %s46, %s49
    %p55 = scmp.eq.s32.totalorder %s9, 0
    %p56 = por %p54, %p55
    %p57 = scmp.ne.s32.totalorder %s46, %s49
    %p58 = scmp.eq.s32.totalorder %s14, 1
    %p59 = por %p57, %p58
    %p60 = scmp.ne.s32.totalorder %s49, %s50
    %p61 = scmp.eq.s32.totalorder %s14, 0
    %p62 = por %p60, %p61
    %p63 = scmp.ne.s32.totalorder %s49, %s50
    %p64 = scmp.eq.s32.totalorder %s15, 1
    %p65 = por %p63, %p64
    %p67 = scmp.ne.s32.totalorder %s50, %s66
    %p68 = scmp.eq.s32.totalorder %s15, 0
    %p69 = por %p67, %p68
    %s70 = sadd.s32 %s16, %s18
    %p71 = scmp.lt.s32.totalorder %s70, 0
    %s72 = scalar_select %p71, %s70, 0
    %s73 = sadd.s32 %s35, %s27
    %p74 = scmp.lt.s32.totalorder %s73, 0
    %s75 = scalar_select %p74, %s73, 0
    %s76 = ssub.s32 %s17, %s31
    %s77 = ssub.s32 %s72, %s75
    %s78 = sor.u32 %s76, %s77
    %p79 = scmp.eq.s32.totalorder %s78, 0
    %s81 = sadd.s32 %s80, 1
    %s82 = scalar_select %p79, %s80, %s81
    %p85 = pneg %p79
    %p86 = scmp.eq.s32.totalorder %s9, 1
    %p87 = por %p85, %p86
    %p88 = scmp.ne.s32.totalorder %s80, %s83
    %p89 = scmp.eq.s32.totalorder %s9, 0
    %p90 = por %p88, %p89
    %p91 = scmp.ne.s32.totalorder %s80, %s83
    %p92 = scmp.eq.s32.totalorder %s14, 1
    %p93 = por %p91, %p92
    %p94 = scmp.ne.s32.totalorder %s83, %s84
    %p95 = scmp.eq.s32.totalorder %s14, 0
    %p96 = por %p94, %p95
    %p97 = scmp.ne.s32.totalorder %s83, %s84
    %p98 = scmp.eq.s32.totalorder %s15, 1
    %p99 = por %p97, %p98
    %p101 = scmp.ne.s32.totalorder %s84, %s100
    %p102 = scmp.eq.s32.totalorder %s15, 0
    %p103 = por %p101, %p102
    %s104 = sadd.s32 %s16, %s18
    %p105 = scmp.lt.s32.totalorder %s104, 0
    %s106 = scalar_select %p105, %s104, 0
    %s107 = sadd.s32 %s35, %s27
    %p108 = scmp.lt.s32.totalorder %s107, 0
    %s109 = scalar_select %p108, %s107, 0
    %s110 = ssub.s32 %s17, %s31
    %s111 = ssub.s32 %s106, %s109
    %s112 = sor.u32 %s110, %s111
    %p113 = scmp.eq.s32.totalorder %s112, 0
    %s115 = sadd.s32 %s114, 1
    %s116 = scalar_select %p113, %s114, %s115
    %p119 = pneg %p113
    %p120 = scmp.eq.s32.totalorder %s9, 1
    %p121 = por %p119, %p120
    %p122 = scmp.ne.s32.totalorder %s114, %s117
    %p123 = scmp.eq.s32.totalorder %s9, 0
    %p124 = por %p122, %p123
    %p125 = scmp.ne.s32.totalorder %s114, %s117
    %p126 = scmp.eq.s32.totalorder %s14, 1
    %p127 = por %p125, %p126
    %p128 = scmp.ne.s32.totalorder %s117, %s118
    %p129 = scmp.eq.s32.totalorder %s14, 0
    %p130 = por %p128, %p129
    %p131 = scmp.ne.s32.totalorder %s117, %s118
    %p132 = scmp.eq.s32.totalorder %s15, 1
    %p133 = por %p131, %p132
    %p135 = scmp.ne.s32.totalorder %s118, %s134
    %p136 = scmp.eq.s32.totalorder %s15, 0
    %p137 = por %p135, %p136
    %s138 = ssub.s32 %s17, %s31
    %s139 = ssub.s32 %s16, %s35
    %s140 = sor.u32 %s138, %s139
    %p141 = scmp.eq.s32.totalorder %s140, 0
    %s143 = sadd.s32 %s142, 1
    %s144 = scalar_select %p141, %s142, %s143
    %p147 = pneg %p141
    %p148 = scmp.eq.s32.totalorder %s9, 1
    %p149 = por %p147, %p148
    %p150 = scmp.ne.s32.totalorder %s142, %s145
    %p151 = scmp.eq.s32.totalorder %s9, 0
    %p152 = por %p150, %p151
    %p153 = scmp.ne.s32.totalorder %s142, %s145
    %p154 = scmp.eq.s32.totalorder %s14, 1
    %p155 = por %p153, %p154
    %p156 = scmp.ne.s32.totalorder %s145, %s146
    %p157 = scmp.eq.s32.totalorder %s14, 0
    %p158 = por %p156, %p157
    %p159 = scmp.ne.s32.totalorder %s145, %s146
    %p160 = scmp.eq.s32.totalorder %s15, 1
    %p161 = por %p159, %p160
    %p163 = scmp.ne.s32.totalorder %s146, %s162
    %p164 = scmp.eq.s32.totalorder %s15, 0
    %p165 = por %p163, %p164
    %p166 = scmp.le.s32.totalorder 1, %s9
    %p167 = scmp.lt.s32.totalorder %s9, 3
    %p168 = pnand %p166, %p167
    %p169 = pneg %p168
    // Predicated region
    $region9: #{tpu_custom_call.1} parent=5 // pred_check
      _
    $region10: #{tpu_custom_call.1} parent=5 // pred_check_branch
      %171 = sbr.rel (%p168) target = $region12
    $region11: #{tpu_custom_call.1} parent=5 // pred_region
      %s172 = ssub.s32 %s9, 1
    $region12: #{tpu_custom_call.1} parent=5 // pred_fallthru
      _
    %p173 = scmp.lt.s32.totalorder %s9, 2
    // Predicated region
    $region13: #{tpu_custom_call.1} parent=5 // pred_check
      %p174 = pneg %p173
    $region14: #{tpu_custom_call.1} parent=5 // pred_check_branch
      %176 = sbr.rel (%p174) target = $region16
    $region15: #{tpu_custom_call.1} parent=5 // pred_region
      // Predicated region
      $region17: #{tpu_custom_call.1} parent=15 // pred_check
        %p177 = pneg %p56
      $region18: #{tpu_custom_call.1} parent=15 // pred_check_branch
        %179 = sbr.rel (%p177) target = $region20
      $region19: #{tpu_custom_call.1} parent=15 // pred_region
        %s180 = sadd.s32 %s16, %s18
        %p181 = scmp.lt.s32.totalorder %s180, 0
        %s182 = scalar_select %p181, %s180, 0
        %s183 = smul.u32 8, %s182
        %p184 = scmp.lt.s32.totalorder %s17, 1
        %s185 = scalar_select %p184, %s17, 1
        %p186 = scmp.lt.s32.totalorder %s183, 7
        %s187 = scalar_select %p186, %s183, 7
        %s188 = smul.addr %s185, 8
        %s189 = sadd.s32 %s187, %s188
        %s190 = smul.addr %s189, 8
        %s191 = scalar_lea.vmem %s0, %s190
        %s192 = sadd.s32 %s16, %s18
        %p193 = scmp.lt.s32.totalorder %s192, 0
        %s194 = scalar_select %p193, %s192, 0
        %s195 = smul.u32 8, %s194
      $region20: #{tpu_custom_call.1} parent=15 // pred_fallthru
        _
      // Predicated region
      $region21: #{tpu_custom_call.1} parent=15 // pred_check
        %p196 = pneg %p90
      $region22: #{tpu_custom_call.1} parent=15 // pred_check_branch
        %198 = sbr.rel (%p196) target = $region24
      $region23: #{tpu_custom_call.1} parent=15 // pred_region
        %s199 = sadd.s32 %s16, %s18
        %p200 = scmp.lt.s32.totalorder %s199, 0
        %s201 = scalar_select %p200, %s199, 0
        %s202 = smul.u32 8, %s201
        %p203 = scmp.lt.s32.totalorder %s17, 1
        %s204 = scalar_select %p203, %s17, 1
        %p205 = scmp.lt.s32.totalorder %s202, 7
        %s206 = scalar_select %p205, %s202, 7
        %s207 = smul.addr %s204, 8
        %s208 = sadd.s32 %s206, %s207
        %s209 = scalar_lea.vmem %s1, %s208
        %s210 = sadd.s32 %s16, %s18
        %p211 = scmp.lt.s32.totalorder %s210, 0
        %s212 = scalar_select %p211, %s210, 0
        %s213 = smul.u32 8, %s212
      $region24: #{tpu_custom_call.1} parent=15 // pred_fallthru
        _
      // Predicated region
      $region25: #{tpu_custom_call.1} parent=15 // pred_check
        %p214 = pneg %p124
      $region26: #{tpu_custom_call.1} parent=15 // pred_check_branch
        %216 = sbr.rel (%p214) target = $region28
      $region27: #{tpu_custom_call.1} parent=15 // pred_region
        %s217 = sadd.s32 %s16, %s18
        %p218 = scmp.lt.s32.totalorder %s217, 0
        %s219 = scalar_select %p218, %s217, 0
        %s220 = smul.u32 8, %s219
        %p221 = scmp.lt.s32.totalorder %s17, 1
        %s222 = scalar_select %p221, %s17, 1
        %p223 = scmp.lt.s32.totalorder %s220, 7
        %s224 = scalar_select %p223, %s220, 7
        %s225 = smul.addr %s222, 8
        %s226 = sadd.s32 %s224, %s225
        %s227 = scalar_lea.vmem %s2, %s226
        %s228 = sadd.s32 %s16, %s18
        %p229 = scmp.lt.s32.totalorder %s228, 0
        %s230 = scalar_select %p229, %s228, 0
        %s231 = smul.u32 8, %s230
      $region28: #{tpu_custom_call.1} parent=15 // pred_fallthru
        _
    $region16: #{tpu_custom_call.1} parent=5 // pred_fallthru
      _
    %p232 = scmp.le.s32.totalorder 1, %s9
    %p233 = scmp.lt.s32.totalorder %s9, 3
    %p234 = pnand %p232, %p233
    %p235 = pneg %p234
    // Predicated region
    $region29: #{tpu_custom_call.1} parent=5 // pred_check
      _
    $region30: #{tpu_custom_call.1} parent=5 // pred_check_branch
      %237 = sbr.rel (%p234) target = $region32
    $region31: #{tpu_custom_call.1} parent=5 // pred_region
      %s238 = ssub.s32 %s9, 1
      %s239 = sadd.s32 %s19, %s21
      %p240 = scmp.lt.s32.totalorder %s239, 0
      %s241 = scalar_select %p240, %s239, 0
      %s242 = smul.u32 8, %s241
      %p243 = scmp.lt.s32.totalorder %s20, 1
      %s244 = scalar_select %p243, %s20, 1
      %p245 = scmp.lt.s32.totalorder %s242, 7
      %s246 = scalar_select %p245, %s242, 7
      %s247 = smul.addr %s244, 8
      %s248 = sadd.s32 %s246, %s247
      %s249 = smul.addr %s248, 8
      %s250 = scalar_lea.vmem %s0, %s249
      %p251 = pneg %p62
      %p252 = pneg %p59
      %s253 = sadd.s32 %s19, %s21
      %p254 = scmp.lt.s32.totalorder %s253, 0
      %s255 = scalar_select %p254, %s253, 0
      %s256 = smul.u32 8, %s255
      %p257 = scmp.lt.s32.totalorder %s20, 1
      %s258 = scalar_select %p257, %s20, 1
      %p259 = scmp.lt.s32.totalorder %s256, 7
      %s260 = scalar_select %p259, %s256, 7
      %s261 = smul.addr %s258, 8
      %s262 = sadd.s32 %s260, %s261
      %s263 = scalar_lea.vmem %s1, %s262
      %p264 = pneg %p96
      %p265 = pneg %p93
      %s266 = sadd.s32 %s19, %s21
      %p267 = scmp.lt.s32.totalorder %s266, 0
      %s268 = scalar_select %p267, %s266, 0
      %s269 = smul.u32 8, %s268
      %p270 = scmp.lt.s32.totalorder %s20, 1
      %s271 = scalar_select %p270, %s20, 1
      %p272 = scmp.lt.s32.totalorder %s269, 7
      %s273 = scalar_select %p272, %s269, 7
      %s274 = smul.addr %s271, 8
      %s275 = sadd.s32 %s273, %s274
      %s276 = scalar_lea.vmem %s2, %s275
      %p277 = pneg %p130
      %p278 = pneg %p127
      %p279 = pneg %p158
      %p280 = pneg %p155
      %p281 = scmp.lt.s32.totalorder %s20, 1
      %s282 = scalar_select %p281, %s20, 1
      %p283 = scmp.lt.s32.totalorder %s19, 0
      %s284 = scalar_select %p283, %s19, 0
      %s285 = sadd.s32 %s284, %s282
      %s286 = smul.addr %s285, 8
      %s287 = scalar_lea.vmem %s3, %s286
      %s288 = sadd.s32 %s19, %s21
      %p289 = scmp.lt.s32.totalorder %s288, 0
      %s290 = scalar_select %p289, %s288, 0
      %s291 = smul.u32 8, %s290
      %p292 = scmp.lt.s32.totalorder %s20, 1
      %s293 = scalar_select %p292, %s20, 1
      %p294 = scmp.lt.s32.totalorder %s291, 7
      %s295 = scalar_select %p294, %s291, 7
      %s296 = smul.addr %s293, 8
      %s297 = sadd.s32 %s295, %s296
      %s298 = smul.addr %s297, 8
      %s299 = scalar_lea.vmem %s0, %s298
      %s300 = sadd.s32 %s19, %s21
      %p301 = scmp.lt.s32.totalorder %s300, 0
      %s302 = scalar_select %p301, %s300, 0
      %s303 = smul.u32 8, %s302
      %s304 = sadd.s32 %s19, %s21
      %p305 = scmp.lt.s32.totalorder %s304, 0
      %s306 = scalar_select %p305, %s304, 0
      %s307 = smul.u32 8, %s306
      %p308 = scmp.lt.s32.totalorder %s20, 1
      %s309 = scalar_select %p308, %s20, 1
      %p310 = scmp.lt.s32.totalorder %s307, 7
      %s311 = scalar_select %p310, %s307, 7
      %s312 = smul.addr %s309, 8
      %s313 = sadd.s32 %s311, %s312
      %s314 = scalar_lea.vmem %s1, %s313
      %s315 = sadd.s32 %s19, %s21
      %p316 = scmp.lt.s32.totalorder %s315, 0
      %s317 = scalar_select %p316, %s315, 0
      %s318 = smul.u32 8, %s317
      %s319 = sadd.s32 %s19, %s21
      %p320 = scmp.lt.s32.totalorder %s319, 0
      %s321 = scalar_select %p320, %s319, 0
      %s322 = smul.u32 8, %s321
      %p323 = scmp.lt.s32.totalorder %s20, 1
      %s324 = scalar_select %p323, %s20, 1
      %p325 = scmp.lt.s32.totalorder %s322, 7
      %s326 = scalar_select %p325, %s322, 7
      %s327 = smul.addr %s324, 8
      %s328 = sadd.s32 %s326, %s327
      %s329 = scalar_lea.vmem %s2, %s328
      %s330 = sadd.s32 %s19, %s21
      %p331 = scmp.lt.s32.totalorder %s330, 0
      %s332 = scalar_select %p331, %s330, 0
      %s333 = smul.u32 8, %s332
      %p334 = scmp.lt.s32.totalorder %s20, 1
      %s335 = scalar_select %p334, %s20, 1
      %p336 = scmp.lt.s32.totalorder %s19, 0
      %s337 = scalar_select %p336, %s19, 0
      %s338 = sadd.s32 %s337, %s335
      %s339 = smul.addr %s338, 8
      %s340 = scalar_lea.vmem %s3, %s339
      %p341 = scmp.eq.s32.totalorder %s21, 0
      // Predicated region
      $region33: #{tpu_custom_call.1} parent=31 // pred_check
        %p342 = pneg %p341
      $region34: #{tpu_custom_call.1} parent=31 // pred_check_branch
        %344 = sbr.rel (%p342) target = $region36
      $region35: #{tpu_custom_call.1} parent=31 // pred_region
        %345 = vst [vmem:[#allocation2] sm:$0x3f] 0.0
        %346 = vst [vmem:[#allocation2 + $0x8] sm:$0x3f] 0.0
        %347 = vst [vmem:[#allocation2 + $0x10] sm:$0x3f] 0.0
        %348 = vst [vmem:[#allocation2 + $0x18] sm:$0x3f] 0.0
        %349 = vst [vmem:[#allocation2 + $0x20] sm:$0x3f] 0.0
        %350 = vst [vmem:[#allocation2 + $0x28] sm:$0x3f] 0.0
        %351 = vst [vmem:[#allocation2 + $0x30] sm:$0x3f] 0.0
        %352 = vst [vmem:[#allocation2 + $0x38] sm:$0x3f] 0.0
      $region36: #{tpu_custom_call.1} parent=31 // pred_fallthru
        _
      %v353 = vld [vmem:[%s314] sm:$0xff]
      %v354 = vld [vmem:[%s329] sm:$0xff]
      %v355 = vmul.f32 %v353, %v354
      %v356 = vld [vmem:[%s299] sm:$0x3f]
      %v357 = vld [vmem:[%s299 + $0x8] sm:$0x3f]
      %v358 = vld [vmem:[%s299 + $0x10] sm:$0x3f]
      %v359 = vld [vmem:[%s299 + $0x18] sm:$0x3f]
      %v360 = vld [vmem:[%s299 + $0x20] sm:$0x3f]
      %v361 = vld [vmem:[%s299 + $0x28] sm:$0x3f]
      %v362 = vld [vmem:[%s299 + $0x30] sm:$0x3f]
      %v363 = vld [vmem:[%s299 + $0x38] sm:$0x3f]
      %v365 = vlaneseq
      %v366 = vshrl.u32 %v365, 7
      %v367 = vsub.s32 0, %v366
      %v368 = vrot.slane %v355, %v367
      %v369 = vlaneseq
      %v370 = vshrl.u32 %v369, 7
      %v371 = vsub.s32 1, %v370
      %v372 = vrot.slane %v355, %v371
      %v373 = vlaneseq
      %v374 = vshrl.u32 %v373, 7
      %v375 = vsub.s32 2, %v374
      %v376 = vrot.slane %v355, %v375
      %v377 = vlaneseq
      %v378 = vshrl.u32 %v377, 7
      %v379 = vsub.s32 3, %v378
      %v380 = vrot.slane %v355, %v379
      %v381 = vlaneseq
      %v382 = vshrl.u32 %v381, 7
      %v383 = vsub.s32 4, %v382
      %v384 = vrot.slane %v355, %v383
      %v385 = vlaneseq
      %v386 = vshrl.u32 %v385, 7
      %v387 = vsub.s32 5, %v386
      %v388 = vrot.slane %v355, %v387
      %v389 = vlaneseq
      %v390 = vshrl.u32 %v389, 7
      %v391 = vsub.s32 6, %v390
      %v392 = vrot.slane %v355, %v391
      %v393 = vlaneseq
      %v394 = vshrl.u32 %v393, 7
      %v395 = vsub.s32 7, %v394
      %v396 = vrot.slane %v355, %v395
      %v405 = vmul.f32 %v356, %v368
      %v406 = vmul.f32 %v357, %v372
      %v407 = vmul.f32 %v358, %v376
      %v408 = vmul.f32 %v359, %v380
      %v409 = vmul.f32 %v360, %v384
      %v410 = vmul.f32 %v361, %v388
      %v411 = vmul.f32 %v362, %v392
      %v412 = vmul.f32 %v363, %v396
      %v413 = vld [vmem:[#allocation2] sm:$0x3f]
      %v414 = vld [vmem:[#allocation2 + $0x8] sm:$0x3f]
      %v415 = vld [vmem:[#allocation2 + $0x10] sm:$0x3f]
      %v416 = vld [vmem:[#allocation2 + $0x18] sm:$0x3f]
      %v417 = vld [vmem:[#allocation2 + $0x20] sm:$0x3f]
      %v418 = vld [vmem:[#allocation2 + $0x28] sm:$0x3f]
      %v419 = vld [vmem:[#allocation2 + $0x30] sm:$0x3f]
      %v420 = vld [vmem:[#allocation2 + $0x38] sm:$0x3f]
      %v421 = vadd.f32 %v413, %v405
      %v422 = vadd.f32 %v414, %v406
      %v423 = vadd.f32 %v415, %v407
      %v424 = vadd.f32 %v416, %v408
      %v425 = vadd.f32 %v417, %v409
      %v426 = vadd.f32 %v418, %v410
      %v427 = vadd.f32 %v419, %v411
      %v428 = vadd.f32 %v420, %v412
      %429 = vst [vmem:[#allocation2] sm:$0x3f] %v421
      %430 = vst [vmem:[#allocation2 + $0x8] sm:$0x3f] %v422
      %431 = vst [vmem:[#allocation2 + $0x10] sm:$0x3f] %v423
      %432 = vst [vmem:[#allocation2 + $0x18] sm:$0x3f] %v424
      %433 = vst [vmem:[#allocation2 + $0x20] sm:$0x3f] %v425
      %434 = vst [vmem:[#allocation2 + $0x28] sm:$0x3f] %v426
      %435 = vst [vmem:[#allocation2 + $0x30] sm:$0x3f] %v427
      %436 = vst [vmem:[#allocation2 + $0x38] sm:$0x3f] %v428
      // Predicated region
      $region37: #{tpu_custom_call.1} parent=31 // pred_check
        %p437 = pneg %p341
      $region38: #{tpu_custom_call.1} parent=31 // pred_check_branch
        %439 = sbr.rel (%p437) target = $region40
      $region39: #{tpu_custom_call.1} parent=31 // pred_region
        %v440 = vld [vmem:[#allocation2] sm:$0x3f]
        %v441 = vld [vmem:[#allocation2 + $0x8] sm:$0x3f]
        %v442 = vld [vmem:[#allocation2 + $0x10] sm:$0x3f]
        %v443 = vld [vmem:[#allocation2 + $0x18] sm:$0x3f]
        %v444 = vld [vmem:[#allocation2 + $0x20] sm:$0x3f]
        %v445 = vld [vmem:[#allocation2 + $0x28] sm:$0x3f]
        %v446 = vld [vmem:[#allocation2 + $0x30] sm:$0x3f]
        %v447 = vld [vmem:[#allocation2 + $0x38] sm:$0x3f]
        %vm448 = vcmask 1045504
        %v449 = vsel %vm448, %v440, 0.0
        %v450 = vsel %vm448, %v441, 0.0
        %v451 = vadd.f32 %v449, %v450
        %v452 = vsel %vm448, %v442, 0.0
        %v453 = vadd.f32 %v451, %v452
        %v454 = vsel %vm448, %v443, 0.0
        %v455 = vadd.f32 %v453, %v454
        %v456 = vsel %vm448, %v444, 0.0
        %v457 = vadd.f32 %v455, %v456
        %v458 = vsel %vm448, %v445, 0.0
        %v459 = vadd.f32 %v457, %v458
        %v460 = vsel %vm448, %v446, 0.0
        %v461 = vadd.f32 %v459, %v460
        %v462 = vsel %vm448, %v447, 0.0
        %v463 = vadd.f32 %v461, %v462
        %464 = vadd.xlane.f32.xlu0 %v463
        %v465 = vpop.xlane.xlu0 %464
        %vm466 = vcmask 5120
        %467 = vst.msk [vmem:[%s340] sm:$0x3f] %vm466, %v465
      $region40: #{tpu_custom_call.1} parent=31 // pred_fallthru
        _
      %p468 = scmp.lt.s32.totalorder %s20, 1
      %s469 = scalar_select %p468, %s20, 1
      %p470 = scmp.lt.s32.totalorder %s19, 0
      %s471 = scalar_select %p470, %s19, 0
      %s472 = sadd.s32 %s471, %s469
      %s473 = smul.addr %s472, 8
      %s474 = scalar_lea.vmem %s3, %s473
      // Predicated region
      $region41: #{tpu_custom_call.1} parent=31 // pred_check
        %p475 = pneg %p155
      $region42: #{tpu_custom_call.1} parent=31 // pred_check_branch
        %477 = sbr.rel (%p475) target = $region44
      $region43: #{tpu_custom_call.1} parent=31 // pred_region
        _
      $region44: #{tpu_custom_call.1} parent=31 // pred_fallthru
        _
    $region32: #{tpu_custom_call.1} parent=5 // pred_fallthru
      _
    %p478 = scmp.le.s32.totalorder 2, %s9
    // Predicated region
    $region45: #{tpu_custom_call.1} parent=5 // pred_check
      %p479 = pneg %p478
    $region46: #{tpu_custom_call.1} parent=5 // pred_check_branch
      %481 = sbr.rel (%p479) target = $region48
    $region47: #{tpu_custom_call.1} parent=5 // pred_region
      %s482 = ssub.s32 %s9, 2
      // Predicated region
      $region49: #{tpu_custom_call.1} parent=47 // pred_check
        %p483 = pneg %p161
      $region50: #{tpu_custom_call.1} parent=47 // pred_check_branch
        %485 = sbr.rel (%p483) target = $region52
      $region51: #{tpu_custom_call.1} parent=47 // pred_region
        %p486 = scmp.lt.s32.totalorder %s23, 1
        %s487 = scalar_select %p486, %s23, 1
        %p488 = scmp.lt.s32.totalorder %s22, 0
        %s489 = scalar_select %p488, %s22, 0
        %s490 = sadd.s32 %s489, %s487
        %s491 = smul.addr %s490, 8
        %s492 = scalar_lea.vmem %s3, %s491
      $region52: #{tpu_custom_call.1} parent=47 // pred_fallthru
        _
    $region48: #{tpu_custom_call.1} parent=5 // pred_fallthru
      _
  $region6: #{tpu_custom_call.1} parent=0 // loop_footer
    %s13 = sadd.s32 1, %s9
  $region7: #{tpu_custom_call.1} parent=0 // loop_footer_branch
    %8 = sbr.rel target = $region3
  $region8: #{tpu_custom_call.1} parent=0 // loop_exit
    _

</llo_original>
